<compile_context>
chip_gen: v7x
topology: tpu7x:2x2x1
jax: 0.10.0
libtpu: 0.0.40
codegen_flags: <defaults>
</compile_context>

<pallas_src>
import jax
import jax.numpy as jnp
from jax import lax
from jax.experimental import pallas as pl
from jax.experimental.pallas import tpu as pltpu

_LANE = 128


# ---------------------------------------------------------------------------
# Shared conv tile: (F, 9C) x (9C, TL) on the MXU, f32 accumulation.
# ---------------------------------------------------------------------------
def _conv_tile(p_ref, w_ref):
    return jnp.dot(w_ref[...], p_ref[0], preferred_element_type=jnp.float32)


# ---------------------------------------------------------------------------
# Kernel 1 (stats only): partial per-channel sum / sum-of-squares of the conv
# output for one (image, lane-tile) grid step.  Conv output is never written
# to HBM.
# ---------------------------------------------------------------------------
def _stats_kernel(p_ref, w_ref, sum_ref, ssq_ref):
    acc = _conv_tile(p_ref, w_ref)                                   # (F, TL) f32
    sum_ref[...] = jnp.sum(acc, axis=1, keepdims=True)[None, None]   # (1,1,F,1)
    ssq_ref[...] = jnp.sum(acc * acc, axis=1, keepdims=True)[None, None]


# ---------------------------------------------------------------------------
# Kernel 2 (fused): recompute the conv tile and apply the precomputed BN
# affine (scale/shift) + ReLU.  Output is written directly in NCHW order.
# ---------------------------------------------------------------------------
def _conv_bn_relu_kernel(p_ref, w_ref, scale_ref, shift_ref, out_ref):
    acc = _conv_tile(p_ref, w_ref)                                   # (F, TL) f32
    out_ref[...] = jnp.maximum(acc * scale_ref[...] + shift_ref[...], 0.0)[None]


def _lane_tile(hw_pad, bytes_per_lane, budget=2 << 20):
    """Largest multiple-of-128 divisor of hw_pad whose block fits the budget."""
    for tl in (4096, 2048, 1024, 512, 256, 128):
        if hw_pad % tl == 0 and tl * bytes_per_lane <= budget:
            return tl
    return _LANE


def convolution_forward(x_nchw, w_oihw, bias, gamma, beta, eps=1e-5):
    """Forward pass equivalent to the PyTorch `Convolution` module (train mode).

    `bias` is accepted for interface parity but unused: train-mode BatchNorm's
    mean subtraction absorbs any per-channel constant and its variance is
    shift-invariant, so the module output does not depend on the conv bias.
    """
    del bias
    N, C, H, W = x_nchw.shape
    F = w_oihw.shape[0]
    K = 9 * C
    HW = H * W
    HW_pad = ((HW + _LANE - 1) // _LANE) * _LANE

    # --- XLA-side im2col (cheap for small C): patches (N, 9C, HW_pad) bf16. ---
    xp = jnp.pad(x_nchw, ((0, 0), (0, 0), (1, 1), (1, 1)))
    patches = jnp.stack(
        [xp[:, :, dy:dy + H, dx:dx + W] for dy in range(3) for dx in range(3)],
        axis=1,
    ).reshape(N, K, HW)
    if HW_pad != HW:
        # Zero patch columns -> zero conv output (no bias) -> they contribute
        # nothing to the BN sums and are sliced off the final output.
        patches = jnp.pad(patches, ((0, 0), (0, 0), (0, HW_pad - HW)))
    patches = patches.astype(jnp.bfloat16)

    # (F, C, 3, 3) -> (F, 9C) with k = (dy*3 + dx)*C + c (matches patch order).
    w2 = jnp.transpose(w_oihw, (0, 2, 3, 1)).reshape(F, K).astype(jnp.bfloat16)

    tl = _lane_tile(HW_pad, bytes_per_lane=2 * K + 4 * F)
    T = HW_pad // tl
    parallel2 = pltpu.CompilerParams(
        dimension_semantics=("parallel", "parallel"))

    # --- Pass 1: BN statistics (tiny outputs; no conv writeback). ---
    part_sum, part_ssq = pl.pallas_call(
        _stats_kernel,
        out_shape=(
            jax.ShapeDtypeStruct((N, T, F, 1), jnp.float32),
            jax.ShapeDtypeStruct((N, T, F, 1), jnp.float32),
        ),
        grid_spec=pltpu.PrefetchScalarGridSpec(
            num_scalar_prefetch=0,
            grid=(N, T),
            in_specs=[
                pl.BlockSpec((1, K, tl), lambda n, t: (n, 0, t)),
                pl.BlockSpec((F, K), lambda n, t: (0, 0)),
            ],
            out_specs=[
                pl.BlockSpec((1, 1, F, 1), lambda n, t: (n, t, 0, 0)),
                pl.BlockSpec((1, 1, F, 1), lambda n, t: (n, t, 0, 0)),
            ],
        ),
        compiler_params=parallel2,
    )(patches, w2)

    # Train-mode BatchNorm2d statistics: batch mean, biased variance.
    # NOTE: E[x^2]-E[x]^2 in f32 is fine at these magnitudes; TODO(synk): use a
    # shifted/Welford form for very large N*H*W.
    count = float(N * HW)
    total_sum = jnp.sum(part_sum, axis=(0, 1))[:, 0]   # (F,)
    total_ssq = jnp.sum(part_ssq, axis=(0, 1))[:, 0]   # (F,)
    mean = total_sum / count
    var = jnp.maximum(total_ssq / count - mean * mean, 0.0)
    scale = (gamma.astype(jnp.float32) / jnp.sqrt(var + eps)).reshape(F, 1)
    shift = (beta.astype(jnp.float32) - mean * scale[:, 0]).reshape(F, 1)

    # --- Pass 2: fused conv recompute + BN affine + ReLU -> final NCHW. ---
    out3 = pl.pallas_call(
        _conv_bn_relu_kernel,
        out_shape=jax.ShapeDtypeStruct((N, F, HW_pad), jnp.float32),
        grid_spec=pltpu.PrefetchScalarGridSpec(
            num_scalar_prefetch=0,
            grid=(N, T),
            in_specs=[
                pl.BlockSpec((1, K, tl), lambda n, t: (n, 0, t)),
                pl.BlockSpec((F, K), lambda n, t: (0, 0)),
                pl.BlockSpec((F, 1), lambda n, t: (0, 0)),
                pl.BlockSpec((F, 1), lambda n, t: (0, 0)),
            ],
            out_specs=pl.BlockSpec((1, F, tl), lambda n, t: (n, 0, t)),
        ),
        compiler_params=parallel2,
    )(patches, w2, scale, shift)

    if HW_pad != HW:
        out3 = out3[:, :, :HW]
    return out3.reshape(N, F, H, W)


def _reference_forward(x_nchw, w_oihw, bias, gamma, beta, eps=1e-5):
    """Pure-JAX reference (same semantics as the PyTorch module in train mode)."""
    conv = lax.conv_general_dilated(
        x_nchw.astype(jnp.float32),
        w_oihw.astype(jnp.float32),
        window_strides=(1, 1),
        padding=((1, 1), (1, 1)),
        dimension_numbers=("NCHW", "OIHW", "NCHW"),
    ) + bias.reshape(1, -1, 1, 1)
    mean = jnp.mean(conv, axis=(0, 2, 3), keepdims=True)
    var = jnp.mean((conv - mean) ** 2, axis=(0, 2, 3), keepdims=True)
    s = (conv - mean) / jnp.sqrt(var + eps)
    s = s * gamma.reshape(1, -1, 1, 1) + beta.reshape(1, -1, 1, 1)
    return jnp.maximum(s, 0.0)


if __name__ == "__main__":
    key = jax.random.PRNGKey(0)
    k_x, k_w, k_b, k_g, k_be = jax.random.split(key, 5)

    batch, in_channels, n_feature, spatial = 2, 4, 8, 16

    x = jax.random.normal(k_x, (batch, in_channels, spatial, spatial), jnp.float32)
    # Conv2d(in_channels, n_feature, kernel_size=3, padding=1) parameters.
    w = 0.2 * jax.random.normal(k_w, (n_feature, in_channels, 3, 3), jnp.float32)
    b = 0.1 * jax.random.normal(k_b, (n_feature,), jnp.float32)
    # BatchNorm2d affine parameters (non-trivial).
    gamma = 1.0 + 0.1 * jax.random.normal(k_g, (n_feature,), jnp.float32)
    beta = 0.1 * jax.random.normal(k_be, (n_feature,), jnp.float32)

    out = jax.block_until_ready(convolution_forward(x, w, b, gamma, beta))
    ref = jax.block_until_ready(_reference_forward(x, w, b, gamma, beta))

    assert out.shape == (batch, n_feature, spatial, spatial), out.shape
    # bf16 conv inputs (f32 MXU accumulation) -> slightly loose tolerance.
    assert jnp.allclose(out, ref, atol=2e-2, rtol=2e-2), (
        float(jnp.max(jnp.abs(out - ref)))
    )
    print("KERNEL_OK")
</pallas_src>

<mosaic_0001>
module attributes {stable_mosaic.version = 11 : i64} {
  func.func @_stats_kernel(%arg0: i32, %arg1: i32, %arg2: memref<1x36x256xbf16, #tpu.memory_space<vmem>>, %arg3: memref<8x36xbf16, #tpu.memory_space<vmem>>, %arg4: memref<1x1x8x1xf32, #tpu.memory_space<vmem>>, %arg5: memref<1x1x8x1xf32, #tpu.memory_space<vmem>>) attributes {dimension_semantics = [#tpu.dimension_semantics<parallel>, #tpu.dimension_semantics<parallel>], iteration_bounds = array<i64: 2, 1>, scalar_prefetch = 0 : i64, scratch_operands = 0 : i64, tpu.core_type = #tpu.core_type<tc>, window_params = [{transform_indices = @transform_0, window_bounds = array<i64: 1, 36, 256>}, {pipeline_mode = #tpu.pipeline_mode<synchronous>, transform_indices = @transform_1, window_bounds = array<i64: 8, 36>}, {transform_indices = @transform_2, window_bounds = array<i64: 1, 1, 8, 1>}, {transform_indices = @transform_3, window_bounds = array<i64: 1, 1, 8, 1>}]} {
    %c0 = arith.constant 0 : index
    %c0_0 = arith.constant 0 : index
    %0 = vector.load %arg3[%c0, %c0_0] : memref<8x36xbf16, #tpu.memory_space<vmem>>, vector<8x36xbf16>
    %c0_1 = arith.constant 0 : index
    %c0_2 = arith.constant 0 : index
    %c0_3 = arith.constant 0 : index
    %1 = vector.load %arg2[%c0_1, %c0_2, %c0_3] : memref<1x36x256xbf16, #tpu.memory_space<vmem>>, vector<1x36x256xbf16>
    %2 = vector.shape_cast %1 : vector<1x36x256xbf16> to vector<36x256xbf16>
    %cst = arith.constant dense<0.000000e+00> : vector<8x256xf32>
    %3 = tpu.matmul %0, %2, %cst {dimension_numbers = #tpu.dot_dimension_numbers<[1], [0], [0], [1], [0, 0, 1, 1], [], []>} : vector<8x36xbf16>, vector<36x256xbf16>, vector<8x256xf32> -> vector<8x256xf32>
    %cst_4 = arith.constant dense<0.000000e+00> : vector<8xf32>
    %4 = vector.multi_reduction <add>, %3, %cst_4 [1] : vector<8x256xf32> to vector<8xf32>
    %5 = vector.shape_cast %4 : vector<8xf32> to vector<8x1xf32>
    %6 = vector.shape_cast %5 : vector<8x1xf32> to vector<1x1x8x1xf32>
    %c0_5 = arith.constant 0 : index
    %c0_6 = arith.constant 0 : index
    %c0_7 = arith.constant 0 : index
    %c0_8 = arith.constant 0 : index
    %7 = vector.load %arg4[%c0_5, %c0_6, %c0_7, %c0_8] : memref<1x1x8x1xf32, #tpu.memory_space<vmem>>, vector<1x1x8x1xf32>
    tpu.vector_store %arg4[%c0_5, %c0_6, %c0_7, %c0_8], %6 {strides = array<i32>} : memref<1x1x8x1xf32, #tpu.memory_space<vmem>>, vector<1x1x8x1xf32>,
    %8 = arith.mulf %3, %3 : vector<8x256xf32>
    %cst_9 = arith.constant dense<0.000000e+00> : vector<8xf32>
    %9 = vector.multi_reduction <add>, %8, %cst_9 [1] : vector<8x256xf32> to vector<8xf32>
    %10 = vector.shape_cast %9 : vector<8xf32> to vector<8x1xf32>
    %11 = vector.shape_cast %10 : vector<8x1xf32> to vector<1x1x8x1xf32>
    %c0_10 = arith.constant 0 : index
    %c0_11 = arith.constant 0 : index
    %c0_12 = arith.constant 0 : index
    %c0_13 = arith.constant 0 : index
    %12 = vector.load %arg5[%c0_10, %c0_11, %c0_12, %c0_13] : memref<1x1x8x1xf32, #tpu.memory_space<vmem>>, vector<1x1x8x1xf32>
    tpu.vector_store %arg5[%c0_10, %c0_11, %c0_12, %c0_13], %11 {strides = array<i32>} : memref<1x1x8x1xf32, #tpu.memory_space<vmem>>, vector<1x1x8x1xf32>,
    return
  }
  func.func @transform_0(%arg0: i32, %arg1: i32) -> (i32, i32, i32) {
    %c0_i32 = arith.constant 0 : i32
    %c0_i32_0 = arith.constant 0 : i32
    return %arg0, %c0_i32, %arg1 : i32, i32, i32
  }
  func.func @transform_1(%arg0: i32, %arg1: i32) -> (i32, i32) {
    %c0_i32 = arith.constant 0 : i32
    %c0_i32_0 = arith.constant 0 : i32
    %c0_i32_1 = arith.constant 0 : i32
    return %c0_i32, %c0_i32_0 : i32, i32
  }
  func.func @transform_2(%arg0: i32, %arg1: i32) -> (i32, i32, i32, i32) {
    %c0_i32 = arith.constant 0 : i32
    %c0_i32_0 = arith.constant 0 : i32
    %c0_i32_1 = arith.constant 0 : i32
    return %arg0, %arg1, %c0_i32, %c0_i32_0 : i32, i32, i32, i32
  }
  func.func @transform_3(%arg0: i32, %arg1: i32) -> (i32, i32, i32, i32) {
    %c0_i32 = arith.constant 0 : i32
    %c0_i32_0 = arith.constant 0 : i32
    %c0_i32_1 = arith.constant 0 : i32
    return %arg0, %arg1, %c0_i32, %c0_i32_0 : i32, i32, i32, i32
  }
}

</mosaic_0001>

<llo_original>
// kernel: tpu_custom_call.1
$region0: #{tpu_custom_call.1}
  #allocation0 [shape = 'u32[]', space=smem, size = 0x4, offset = 0x4, fixed_abs, tag = 'smem constant byte address 0x4 - core index']
  #allocation1 [shape = 'u32[144,128]{1,0:T(1,128)}', space=vmem, size = 0x12000, scoped, tag = 'internal scratch']
  %s0 = inlined_call_operand.vmem [shape: bf16[2,36,256], index: 0, kind: input, shape index: {}]
  %s1 = inlined_call_operand.vmem [shape: bf16[8,36], index: 1, kind: input, shape index: {}]
  %s2 = inlined_call_operand.vmem [shape: f32[2,1,8,1], index: 2, kind: output, shape index: {0}]
  %s3 = inlined_call_operand.vmem [shape: f32[2,1,8,1], index: 3, kind: output, shape index: {1}]
  %4 = xla_tuple %s2, %s3
  %s5 = sld [smem:[#allocation0]]
  $region49: #{tpu_custom_call.1} parent=0
    _
  %s7 = ssub.s32 1, %s5
  %s8 = scalar_select 0, %s7, %s5
  loop: start=0, step=1, limit=4
  $region2: #{tpu_custom_call.1} parent=0 // loop_pre_header
    _
  $region3: #{tpu_custom_call.1} parent=0 // loop_header
    %s10 = sphi 0, %s14
    %p11 = scmp.ge.s32.totalorder %s10, 4
    %s17 = sphi 0, %s29
    %s18 = sphi 0, %s25
    %s19 = sphi 0, %s17
    %s20 = sphi 0, %s18
    %s21 = sphi 0, %s19
    %s22 = sphi 0, %s20
    %s34 = sphi 0, %s36
    %s37 = sphi 0, %s34
    %s38 = sphi 0, %s37
    %s54 = sphi 0, %s38
    %s58 = sphi 0, %s58
    %s60 = sphi 0, %s58
    %s61 = sphi 0, %s60
    %s75 = sphi 0, %s61
    %s83 = sphi 0, %s85
    %s86 = sphi 0, %s83
    %s87 = sphi 0, %s86
    %s103 = sphi 0, %s87
    %s111 = sphi 0, %s113
    %s114 = sphi 0, %s111
    %s115 = sphi 0, %s114
    %s131 = sphi 0, %s115
  $region4: #{tpu_custom_call.1} parent=0 // loop_header_branch
    %13 = sbr.rel (%p11) target = $region8
  $region5: #{tpu_custom_call.1} parent=0 // loop_body
    %s15 = ssub.s32 %s10, 1
    %s16 = ssub.s32 %s10, 2
    %s23 = sadd.s32 1, %s18
    %p24 = scmp.ge.s32.totalorder %s23, 1
    %s25 = scalar_select %p24, 0, %s23
    %s26 = sadd.s32 1, %s17
    %s27 = scalar_select %p24, %s26, %s17
    %p28 = scmp.ge.s32.totalorder %s27, 2
    %s29 = scalar_select %p28, 0, %s27
    %s30 = ssub.s32 %s17, %s29
    %s31 = ssub.s32 %s18, %s25
    %s32 = sor.u32 %s30, %s31
    %p33 = scmp.eq.s32.totalorder %s32, 0
    %s35 = sadd.s32 %s34, 1
    %s36 = scalar_select %p33, %s34, %s35
    %p39 = pneg %p33
    %p40 = scmp.eq.s32.totalorder %s10, 1
    %p41 = por %p39, %p40
    %p42 = scmp.ne.s32.totalorder %s34, %s37
    %p43 = scmp.eq.s32.totalorder %s10, 0
    %p44 = por %p42, %p43
    %p45 = scmp.ne.s32.totalorder %s34, %s37
    %p46 = scmp.eq.s32.totalorder %s15, 1
    %p47 = por %p45, %p46
    %p48 = scmp.ne.s32.totalorder %s37, %s38
    %p49 = scmp.eq.s32.totalorder %s15, 0
    %p50 = por %p48, %p49
    %p51 = scmp.ne.s32.totalorder %s37, %s38
    %p52 = scmp.eq.s32.totalorder %s16, 1
    %p53 = por %p51, %p52
    %p55 = scmp.ne.s32.totalorder %s38, %s54
    %p56 = scmp.eq.s32.totalorder %s16, 0
    %p57 = por %p55, %p56
    %s59 = sadd.s32 %s58, 1
    %p62 = scmp.eq.s32.totalorder %s10, 1
    %p63 = scmp.ne.s32.totalorder %s58, %s60
    %p64 = scmp.eq.s32.totalorder %s10, 0
    %p65 = por %p63, %p64
    %p66 = scmp.ne.s32.totalorder %s58, %s60
    %p67 = scmp.eq.s32.totalorder %s15, 1
    %p68 = por %p66, %p67
    %p69 = scmp.ne.s32.totalorder %s60, %s61
    %p70 = scmp.eq.s32.totalorder %s15, 0
    %p71 = por %p69, %p70
    %p72 = scmp.ne.s32.totalorder %s60, %s61
    %p73 = scmp.eq.s32.totalorder %s16, 1
    %p74 = por %p72, %p73
    %p76 = scmp.ne.s32.totalorder %s61, %s75
    %p77 = scmp.eq.s32.totalorder %s16, 0
    %p78 = por %p76, %p77
    %s79 = ssub.s32 %s17, %s29
    %s80 = ssub.s32 %s18, %s25
    %s81 = sor.u32 %s79, %s80
    %p82 = scmp.eq.s32.totalorder %s81, 0
    %s84 = sadd.s32 %s83, 1
    %s85 = scalar_select %p82, %s83, %s84
    %p88 = pneg %p82
    %p89 = scmp.eq.s32.totalorder %s10, 1
    %p90 = por %p88, %p89
    %p91 = scmp.ne.s32.totalorder %s83, %s86
    %p92 = scmp.eq.s32.totalorder %s10, 0
    %p93 = por %p91, %p92
    %p94 = scmp.ne.s32.totalorder %s83, %s86
    %p95 = scmp.eq.s32.totalorder %s15, 1
    %p96 = por %p94, %p95
    %p97 = scmp.ne.s32.totalorder %s86, %s87
    %p98 = scmp.eq.s32.totalorder %s15, 0
    %p99 = por %p97, %p98
    %p100 = scmp.ne.s32.totalorder %s86, %s87
    %p101 = scmp.eq.s32.totalorder %s16, 1
    %p102 = por %p100, %p101
    %p104 = scmp.ne.s32.totalorder %s87, %s103
    %p105 = scmp.eq.s32.totalorder %s16, 0
    %p106 = por %p104, %p105
    %s107 = ssub.s32 %s17, %s29
    %s108 = ssub.s32 %s18, %s25
    %s109 = sor.u32 %s107, %s108
    %p110 = scmp.eq.s32.totalorder %s109, 0
    %s112 = sadd.s32 %s111, 1
    %s113 = scalar_select %p110, %s111, %s112
    %p116 = pneg %p110
    %p117 = scmp.eq.s32.totalorder %s10, 1
    %p118 = por %p116, %p117
    %p119 = scmp.ne.s32.totalorder %s111, %s114
    %p120 = scmp.eq.s32.totalorder %s10, 0
    %p121 = por %p119, %p120
    %p122 = scmp.ne.s32.totalorder %s111, %s114
    %p123 = scmp.eq.s32.totalorder %s15, 1
    %p124 = por %p122, %p123
    %p125 = scmp.ne.s32.totalorder %s114, %s115
    %p126 = scmp.eq.s32.totalorder %s15, 0
    %p127 = por %p125, %p126
    %p128 = scmp.ne.s32.totalorder %s114, %s115
    %p129 = scmp.eq.s32.totalorder %s16, 1
    %p130 = por %p128, %p129
    %p132 = scmp.ne.s32.totalorder %s115, %s131
    %p133 = scmp.eq.s32.totalorder %s16, 0
    %p134 = por %p132, %p133
    %p135 = scmp.le.s32.totalorder 1, %s10
    %p136 = scmp.lt.s32.totalorder %s10, 3
    %p137 = pnand %p135, %p136
    %p138 = pneg %p137
    // Predicated region
    $region9: #{tpu_custom_call.1} parent=5 // pred_check
      _
    $region10: #{tpu_custom_call.1} parent=5 // pred_check_branch
      %140 = sbr.rel (%p137) target = $region12
    $region11: #{tpu_custom_call.1} parent=5 // pred_region
      %s141 = ssub.s32 %s10, 1
      // Predicated region
      $region13: #{tpu_custom_call.1} parent=11 // pred_check
        %p142 = pneg %p71
      $region14: #{tpu_custom_call.1} parent=11 // pred_check_branch
        %144 = sbr.rel (%p142) target = $region16
      $region15: #{tpu_custom_call.1} parent=11 // pred_region
        _
      $region16: #{tpu_custom_call.1} parent=11 // pred_fallthru
        _
    $region12: #{tpu_custom_call.1} parent=5 // pred_fallthru
      _
    %p145 = scmp.lt.s32.totalorder %s10, 2
    // Predicated region
    $region17: #{tpu_custom_call.1} parent=5 // pred_check
      %p146 = pneg %p145
    $region18: #{tpu_custom_call.1} parent=5 // pred_check_branch
      %148 = sbr.rel (%p146) target = $region20
    $region19: #{tpu_custom_call.1} parent=5 // pred_region
      // Predicated region
      $region21: #{tpu_custom_call.1} parent=19 // pred_check
        %p149 = pneg %p44
      $region22: #{tpu_custom_call.1} parent=19 // pred_check_branch
        %151 = sbr.rel (%p149) target = $region24
      $region23: #{tpu_custom_call.1} parent=19 // pred_region
        %s152 = smul.u32 2, %s18
        %p153 = scmp.lt.s32.totalorder %s17, 1
        %s154 = scalar_select %p153, %s17, 1
        %p155 = scmp.lt.s32.totalorder %s152, 1
        %s156 = scalar_select %p155, %s152, 1
        %s157 = smul.addr %s154, 10
        %s158 = sadd.s32 %s156, %s157
        %s159 = smul.addr %s158, 4
        %s160 = scalar_lea.vmem %s0, %s159
        %s161 = smul.u32 2, %s18
      $region24: #{tpu_custom_call.1} parent=19 // pred_fallthru
        _
    $region20: #{tpu_custom_call.1} parent=5 // pred_fallthru
      _
    %p162 = scmp.le.s32.totalorder 1, %s10
    %p163 = scmp.lt.s32.totalorder %s10, 3
    %p164 = pnand %p162, %p163
    %p165 = pneg %p164
    // Predicated region
    $region25: #{tpu_custom_call.1} parent=5 // pred_check
      _
    $region26: #{tpu_custom_call.1} parent=5 // pred_check_branch
      %167 = sbr.rel (%p164) target = $region28
    $region27: #{tpu_custom_call.1} parent=5 // pred_region
      %s168 = ssub.s32 %s10, 1
      %s169 = smul.u32 2, %s20
      %p170 = scmp.lt.s32.totalorder %s19, 1
      %s171 = scalar_select %p170, %s19, 1
      %p172 = scmp.lt.s32.totalorder %s169, 1
      %s173 = scalar_select %p172, %s169, 1
      %s174 = smul.addr %s171, 10
      %s175 = sadd.s32 %s173, %s174
      %s176 = smul.addr %s175, 4
      %s177 = scalar_lea.vmem %s0, %s176
      %p178 = pneg %p50
      %p179 = pneg %p47
      %p180 = pneg %p71
      %p181 = pneg %p68
      %p182 = pneg %p99
      %p183 = pneg %p96
      %p184 = scmp.lt.s32.totalorder %s19, 1
      %s185 = scalar_select %p184, %s19, 1
      %p186 = scmp.lt.s32.totalorder %s20, 0
      %s187 = scalar_select %p186, %s20, 0
      %s188 = sadd.s32 %s187, %s185
      %s189 = smul.addr %s188, 8
      %s190 = scalar_lea.vmem %s2, %s189
      %p191 = pneg %p127
      %p192 = pneg %p124
      %p193 = scmp.lt.s32.totalorder %s19, 1
      %s194 = scalar_select %p193, %s19, 1
      %p195 = scmp.lt.s32.totalorder %s20, 0
      %s196 = scalar_select %p195, %s20, 0
      %s197 = sadd.s32 %s196, %s194
      %s198 = smul.addr %s197, 8
      %s199 = scalar_lea.vmem %s3, %s198
      %s200 = smul.u32 2, %s20
      %p201 = scmp.lt.s32.totalorder %s19, 1
      %s202 = scalar_select %p201, %s19, 1
      %p203 = scmp.lt.s32.totalorder %s200, 1
      %s204 = scalar_select %p203, %s200, 1
      %s205 = smul.addr %s202, 10
      %s206 = sadd.s32 %s204, %s205
      %s207 = smul.addr %s206, 4
      %s208 = scalar_lea.vmem %s0, %s207
      %s209 = smul.u32 2, %s20
      %p210 = scmp.lt.s32.totalorder %s19, 1
      %s211 = scalar_select %p210, %s19, 1
      %p212 = scmp.lt.s32.totalorder %s20, 0
      %s213 = scalar_select %p212, %s20, 0
      %s214 = sadd.s32 %s213, %s211
      %s215 = smul.addr %s214, 8
      %s216 = scalar_lea.vmem %s2, %s215
      %p217 = scmp.lt.s32.totalorder %s19, 1
      %s218 = scalar_select %p217, %s19, 1
      %p219 = scmp.lt.s32.totalorder %s20, 0
      %s220 = scalar_select %p219, %s20, 0
      %s221 = sadd.s32 %s220, %s218
      %s222 = smul.addr %s221, 8
      %s223 = scalar_lea.vmem %s3, %s222
      %v225 = vld [vmem:[%s1] sm:$0xf]
      %v226 = vld [vmem:[%s208] sm:$0xff]
      %v227 = vld [vmem:[%s208 + $0x8] sm:$0xff]
      %v228 = vld [vmem:[%s208 + $0x10] sm:$0xff]
      %v229 = vld [vmem:[%s208 + $0x18] sm:$0xff]
      %v230 = vld [vmem:[%s208 + $0x20] sm:$0x33]
      %v236 = vunpack.c.l.b16 %v226
      %v237 = vunpack.c.h.b16 %v226
      %v238 = vunpack.c.l.b16 %v227
      %v239 = vunpack.c.h.b16 %v227
      %v240 = vunpack.c.l.b16 %v228
      %v241 = vunpack.c.h.b16 %v228
      %v242 = vunpack.c.l.b16 %v229
      %v243 = vunpack.c.h.b16 %v229
      %v244 = vunpack.c.l.b16 %v230
      %v245 = vunpack.c.h.b16 %v230
      %v246 = vpack.c.b16 %v238, %v236
      %v247 = vpack.c.b16 %v239, %v237
      %v248 = vpack.c.b16 %v242, %v240
      %v249 = vpack.c.b16 %v243, %v241
      %v250 = vpack.c.b16 %v244, %v244
      %v251 = vpack.c.b16 %v245, %v245
      %vm256 = vcmask 293888
      %v258 = vsel %vm256, %v225, 0
      %vm260 = vcmask 1041408
      %v262 = vsel %vm260, %v250, 0
      %v265 = vsel %vm260, %v251, 0
      %267 = vmatprep.subr.bf16.mxu0 %v247
      %268 = vmatpush1.bf16.msra.mxu0 %v246
      %269 = vmatprep.subr.bf16.mxu0 %v249
      %270 = vmatpush1.bf16.msra.mxu0 %v248
      %271 = vmatprep.subr.bf16.mxu0 %v265
      %272 = vmatpush1.bf16.msra.mxu0 %v262
      %273 = vmatprep.subr.bf16.mxu0 0
      %274 = vmatpush1.bf16.msra.mxu0 0
      %275 = vmatprep.subr.bf16.mxu0 0
      %276 = vmatpush1.bf16.msra.mxu0 0
      %277 = vmatprep.subr.bf16.mxu0 0
      %278 = vmatpush1.bf16.msra.mxu0 0
      %279 = vmatprep.subr.bf16.mxu0 0
      %280 = vmatpush1.bf16.msra.mxu0 0
      %281 = vmatprep.subr.bf16.mxu0 0
      %282 = vmatpush1.bf16.msra.mxu0 0
      %283 = vmatprep.subr.bf16.mxu0 0
      %284 = vmatpush1.bf16.msra.mxu0 0
      %285 = vmatprep.subr.bf16.mxu0 0
      %286 = vmatpush1.bf16.msra.mxu0 0
      %287 = vmatprep.subr.bf16.mxu0 0
      %288 = vmatpush1.bf16.msra.mxu0 0
      %289 = vmatprep.subr.bf16.mxu0 0
      %290 = vmatpush1.bf16.msra.mxu0 0
      %291 = vmatprep.subr.bf16.mxu0 0
      %292 = vmatpush1.bf16.msra.mxu0 0
      %293 = vmatprep.subr.bf16.mxu0 0
      %294 = vmatpush1.bf16.msra.mxu0 0
      %295 = vmatprep.subr.bf16.mxu0 0
      %296 = vmatpush1.bf16.msra.mxu0 0
      %297 = vmatprep.subr.bf16.mxu0 0
      %298 = vmatpush1.bf16.msra.mxu0 0
      %299 = vmatprep.mubr.bf16.mxu0 0
      %300 = vmatmul.mubr.bf16.gmra.mrb[0].mxu0 %v258
      %v301 = vpop.f32.mrb[0].mxu0
      %v302 = vadd.f32 0.0, %v301
      %v303 = vpop.f32.mrb[0].mxu0
      %v304 = vadd.f32 0.0, %v303
      %v305 = vpop.f32.mrb[0].mxu0
      %v306 = vpop.f32.mrb[0].mxu0
      %307 = vdwg.mxu0
      %v308 = vadd.f32 %v302, %v304
      %309 = vadd.xlane.f32.xlu0 %v308
      %v310 = vpop.xlane.xlu0 %309
      %vm311 = vcmask 7168
      %312 = vst.msk [vmem:[%s216] sm:$0xff] %vm311, %v310
      %v313 = vmul.f32 %v302, %v302
      %v314 = vmul.f32 %v304, %v304
      %v315 = vadd.f32 %v313, %v314
      %316 = vadd.xlane.f32.xlu0 %v315
      %v317 = vpop.xlane.xlu0 %316
      %318 = vst.msk [vmem:[%s223] sm:$0xff] %vm311, %v317
      %p319 = scmp.lt.s32.totalorder %s19, 1
      %s320 = scalar_select %p319, %s19, 1
      %p321 = scmp.lt.s32.totalorder %s20, 0
      %s322 = scalar_select %p321, %s20, 0
      %s323 = sadd.s32 %s322, %s320
      %s324 = smul.addr %s323, 8
      %s325 = scalar_lea.vmem %s2, %s324
      %p326 = scmp.lt.s32.totalorder %s19, 1
      %s327 = scalar_select %p326, %s19, 1
      %p328 = scmp.lt.s32.totalorder %s20, 0
      %s329 = scalar_select %p328, %s20, 0
      %s330 = sadd.s32 %s329, %s327
      %s331 = smul.addr %s330, 8
      %s332 = scalar_lea.vmem %s3, %s331
      // Predicated region
      $region29: #{tpu_custom_call.1} parent=27 // pred_check
        %p333 = pneg %p96
      $region30: #{tpu_custom_call.1} parent=27 // pred_check_branch
        %335 = sbr.rel (%p333) target = $region32
      $region31: #{tpu_custom_call.1} parent=27 // pred_region
        _
      $region32: #{tpu_custom_call.1} parent=27 // pred_fallthru
        _
      // Predicated region
      $region33: #{tpu_custom_call.1} parent=27 // pred_check
        %p336 = pneg %p124
      $region34: #{tpu_custom_call.1} parent=27 // pred_check_branch
        %338 = sbr.rel (%p336) target = $region36
      $region35: #{tpu_custom_call.1} parent=27 // pred_region
        _
      $region36: #{tpu_custom_call.1} parent=27 // pred_fallthru
        _
    $region28: #{tpu_custom_call.1} parent=5 // pred_fallthru
      _
    %p339 = scmp.le.s32.totalorder 2, %s10
    // Predicated region
    $region37: #{tpu_custom_call.1} parent=5 // pred_check
      %p340 = pneg %p339
    $region38: #{tpu_custom_call.1} parent=5 // pred_check_branch
      %342 = sbr.rel (%p340) target = $region40
    $region39: #{tpu_custom_call.1} parent=5 // pred_region
      %s343 = ssub.s32 %s10, 2
      // Predicated region
      $region41: #{tpu_custom_call.1} parent=39 // pred_check
        %p344 = pneg %p102
      $region42: #{tpu_custom_call.1} parent=39 // pred_check_branch
        %346 = sbr.rel (%p344) target = $region44
      $region43: #{tpu_custom_call.1} parent=39 // pred_region
        %p347 = scmp.lt.s32.totalorder %s21, 1
        %s348 = scalar_select %p347, %s21, 1
        %p349 = scmp.lt.s32.totalorder %s22, 0
        %s350 = scalar_select %p349, %s22, 0
        %s351 = sadd.s32 %s350, %s348
        %s352 = smul.addr %s351, 8
        %s353 = scalar_lea.vmem %s2, %s352
      $region44: #{tpu_custom_call.1} parent=39 // pred_fallthru
        _
      // Predicated region
      $region45: #{tpu_custom_call.1} parent=39 // pred_check
        %p354 = pneg %p130
      $region46: #{tpu_custom_call.1} parent=39 // pred_check_branch
        %356 = sbr.rel (%p354) target = $region48
      $region47: #{tpu_custom_call.1} parent=39 // pred_region
        %p357 = scmp.lt.s32.totalorder %s21, 1
        %s358 = scalar_select %p357, %s21, 1
        %p359 = scmp.lt.s32.totalorder %s22, 0
        %s360 = scalar_select %p359, %s22, 0
        %s361 = sadd.s32 %s360, %s358
        %s362 = smul.addr %s361, 8
        %s363 = scalar_lea.vmem %s3, %s362
      $region48: #{tpu_custom_call.1} parent=39 // pred_fallthru
        _
    $region40: #{tpu_custom_call.1} parent=5 // pred_fallthru
      _
  $region6: #{tpu_custom_call.1} parent=0 // loop_footer
    %s14 = sadd.s32 1, %s10
  $region7: #{tpu_custom_call.1} parent=0 // loop_footer_branch
    %9 = sbr.rel target = $region3
  $region8: #{tpu_custom_call.1} parent=0 // loop_exit
    _

</llo_original>
